<compile_context>
chip_gen: v7x
topology: tpu7x:2x2x1
jax: 0.10.0
libtpu: 0.0.40
codegen_flags: <defaults>
</compile_context>

<pallas_src>
import functools

import jax
import jax.numpy as jnp
from jax.experimental import pallas as pl
from jax.experimental.pallas import tpu as pltpu

SIGMA = 1.0
LANES = 128
DEFAULT_ROW_TILE = 1024  # (1024,128) f32 block = 512 KiB/input; 4 in x 2 bufs = 4 MiB


def _ce_kernel(si_ref, sj_ref, ui_ref, uj_ref, out_ref, *,
               n_valid, row_tile, need_mask):
    s_i = si_ref[...].astype(jnp.float32)
    s_j = sj_ref[...].astype(jnp.float32)
    u_i = ui_ref[...].astype(jnp.float32)
    u_j = uj_ref[...].astype(jnp.float32)

    # bar_P_ij = 1 if u_i > u_j, 0 if u_i < u_j, 0.5 on ties (folds 0.5*(1+s_ij))
    bar_p = jnp.where(u_i > u_j, 1.0, jnp.where(u_i < u_j, 0.0, 0.5))

    x = s_i - s_j
    if SIGMA != 1.0:
        x = jnp.float32(SIGMA) * x

    # C = -bar_p*log(sigmoid(x)) - (1-bar_p)*log(1-sigmoid(x)) == softplus(x) - bar_p*x
    # stable softplus: max(x,0) + log1p(exp(-|x|))
    sp = jnp.maximum(x, 0.0) + jnp.log1p(jnp.exp(-jnp.abs(x)))
    c = sp - bar_p * x

    if need_mask:
        row0 = pl.program_id(0) * row_tile
        rows = jax.lax.broadcasted_iota(jnp.int32, (row_tile, LANES), 0)
        lanes = jax.lax.broadcasted_iota(jnp.int32, (row_tile, LANES), 1)
        flat_idx = (row0 + rows) * LANES + lanes
        c = jnp.where(flat_idx < n_valid, c, 0.0)

    # Per-block partial sum. Reduce only across sublane groups (cheap VPU adds,
    # no cross-lane XLU work); final cross-lane reduce happens outside.
    c3 = c.reshape(row_tile // 8, 8, LANES)
    out_ref[...] = jnp.sum(c3, axis=0, keepdims=True)


def cross_entropy_loss(s_i, s_j, u_i, u_j, *, row_tile=DEFAULT_ROW_TILE):
    assert s_i.shape == s_j.shape == u_i.shape == u_j.shape
    n = s_i.size
    itemsize = jnp.dtype(s_i.dtype).itemsize
    # sublane packing: 8 rows for 32-bit, 16 for bf16, 32 for 8-bit dtypes
    pack = max(8, 32 // max(1, itemsize))

    m = pl.cdiv(n, LANES)
    # row tile: multiple of the packing factor, never larger than (padded) m
    row_tile = min(row_tile, ((m + pack - 1) // pack) * pack)
    row_tile = ((row_tile + pack - 1) // pack) * pack
    m_pad = ((m + row_tile - 1) // row_tile) * row_tile
    n_pad = m_pad * LANES
    grid = (m_pad // row_tile,)
    need_mask = (n_pad != n)

    def to2d(x):
        # keep native dtype in HBM; kernel casts to f32 after load
        x = x.reshape(-1)
        if n_pad != n:
            x = jnp.pad(x, (0, n_pad - n))
        return x.reshape(m_pad, LANES)

    in_spec = pl.BlockSpec((row_tile, LANES), lambda i: (i, 0))
    kernel = functools.partial(
        _ce_kernel, n_valid=n, row_tile=row_tile, need_mask=need_mask)

    partials = pl.pallas_call(
        kernel,
        out_shape=jax.ShapeDtypeStruct((grid[0], 8, LANES), jnp.float32),
        grid_spec=pltpu.PrefetchScalarGridSpec(
            num_scalar_prefetch=0,
            grid=grid,
            in_specs=[in_spec, in_spec, in_spec, in_spec],
            out_specs=pl.BlockSpec((1, 8, LANES), lambda i: (i, 0, 0)),
        ),
        compiler_params=pltpu.CompilerParams(
            dimension_semantics=("parallel",),
            vmem_limit_bytes=32 << 20,
        ),
        cost_estimate=pl.CostEstimate(
            flops=10 * n,
            transcendentals=2 * n,
            bytes_accessed=4 * n * itemsize + grid[0] * 8 * LANES * 4,
        ),
    )(to2d(s_i), to2d(s_j), to2d(u_i), to2d(u_j))

    return jnp.sum(partials) / jnp.float32(n)


def _reference(s_i, s_j, u_i, u_j):
    # Original PyTorch semantics (sigmoid + logs), for validation.
    s_ij = jnp.where(u_i > u_j, 1.0, jnp.where(u_i < u_j, -1.0, 0.0))
    bar_p = 0.5 * (1.0 + s_ij)
    p = jax.nn.sigmoid(SIGMA * (s_i - s_j))
    c = -bar_p * jnp.log(p) - (1.0 - bar_p) * jnp.log(1.0 - p)
    return jnp.mean(c)


if __name__ == "__main__":
    key = jax.random.PRNGKey(0)
    k1, k2, k3, k4 = jax.random.split(key, 4)

    # Main check: shape divisible by 128.
    shape = (2, 4, 16, 16)  # 2048 elements -> (16, 128) slab
    s_i = jax.random.normal(k1, shape, dtype=jnp.float32)
    s_j = jax.random.normal(k2, shape, dtype=jnp.float32)
    u_i = jax.random.normal(k3, shape, dtype=jnp.float32)
    u_j = jax.random.normal(k4, shape, dtype=jnp.float32)

    loss = jax.block_until_ready(cross_entropy_loss(s_i, s_j, u_i, u_j))
    ref = _reference(s_i, s_j, u_i, u_j)
    assert jnp.allclose(loss, ref, rtol=1e-5, atol=1e-5), (loss, ref)

    # Secondary check: awkward size -> exercises padding + in-kernel mask.
    shape2 = (3, 5, 7)  # 105 elements
    a = jax.random.normal(k1, shape2, dtype=jnp.float32)
    b = jax.random.normal(k2, shape2, dtype=jnp.float32)
    c = jax.random.normal(k3, shape2, dtype=jnp.float32)
    d = jax.random.normal(k4, shape2, dtype=jnp.float32)
    loss2 = jax.block_until_ready(cross_entropy_loss(a, b, c, d))
    ref2 = _reference(a, b, c, d)
    assert jnp.allclose(loss2, ref2, rtol=1e-5, atol=1e-5), (loss2, ref2)

    print("KERNEL_OK")
</pallas_src>

<mosaic_0001>
module attributes {stable_mosaic.version = 11 : i64} {
  func.func @_ce_kernel(%arg0: i32, %arg1: memref<16x128xf32, #tpu.memory_space<vmem>>, %arg2: memref<16x128xf32, #tpu.memory_space<vmem>>, %arg3: memref<16x128xf32, #tpu.memory_space<vmem>>, %arg4: memref<16x128xf32, #tpu.memory_space<vmem>>, %arg5: memref<1x8x128xf32, #tpu.memory_space<vmem>>) attributes {dimension_semantics = [#tpu.dimension_semantics<parallel>], iteration_bounds = array<i64: 1>, scalar_prefetch = 0 : i64, scratch_operands = 0 : i64, tpu.core_type = #tpu.core_type<tc>, window_params = [{transform_indices = @transform_0, window_bounds = array<i64: 16, 128>}, {transform_indices = @transform_1, window_bounds = array<i64: 16, 128>}, {transform_indices = @transform_2, window_bounds = array<i64: 16, 128>}, {transform_indices = @transform_3, window_bounds = array<i64: 16, 128>}, {transform_indices = @transform_4, window_bounds = array<i64: 1, 8, 128>}]} {
    %c0 = arith.constant 0 : index
    %c0_0 = arith.constant 0 : index
    %0 = vector.load %arg1[%c0, %c0_0] : memref<16x128xf32, #tpu.memory_space<vmem>>, vector<16x128xf32>
    %c0_1 = arith.constant 0 : index
    %c0_2 = arith.constant 0 : index
    %1 = vector.load %arg2[%c0_1, %c0_2] : memref<16x128xf32, #tpu.memory_space<vmem>>, vector<16x128xf32>
    %c0_3 = arith.constant 0 : index
    %c0_4 = arith.constant 0 : index
    %2 = vector.load %arg3[%c0_3, %c0_4] : memref<16x128xf32, #tpu.memory_space<vmem>>, vector<16x128xf32>
    %c0_5 = arith.constant 0 : index
    %c0_6 = arith.constant 0 : index
    %3 = vector.load %arg4[%c0_5, %c0_6] : memref<16x128xf32, #tpu.memory_space<vmem>>, vector<16x128xf32>
    %4 = arith.cmpf ogt, %2, %3 : vector<16x128xf32>
    %5 = arith.cmpf olt, %2, %3 : vector<16x128xf32>
    %cst = arith.constant 0.000000e+00 : f32
    %cst_7 = arith.constant 5.000000e-01 : f32
    %6 = vector.broadcast %cst : f32 to vector<16x128xf32>
    %7 = vector.broadcast %cst_7 : f32 to vector<16x128xf32>
    %8 = arith.select %5, %6, %7 : vector<16x128xi1>, vector<16x128xf32>
    %cst_8 = arith.constant 1.000000e+00 : f32
    %9 = vector.broadcast %cst_8 : f32 to vector<16x128xf32>
    %10 = arith.select %4, %9, %8 : vector<16x128xi1>, vector<16x128xf32>
    %11 = arith.subf %0, %1 : vector<16x128xf32>
    %cst_9 = arith.constant 0.000000e+00 : f32
    %12 = vector.broadcast %cst_9 : f32 to vector<16x128xf32>
    %13 = arith.maximumf %11, %12 : vector<16x128xf32>
    %14 = math.absf %11 : vector<16x128xf32>
    %cst_10 = arith.constant 0.000000e+00 : f32
    %15 = vector.broadcast %cst_10 : f32 to vector<16x128xf32>
    %16 = arith.subf %15, %14 : vector<16x128xf32>
    %17 = math.exp %16 : vector<16x128xf32>
    %18 = math.log1p %17 : vector<16x128xf32>
    %19 = arith.addf %13, %18 : vector<16x128xf32>
    %20 = arith.mulf %10, %11 : vector<16x128xf32>
    %21 = arith.subf %19, %20 : vector<16x128xf32>
    %22 = vector.shape_cast %21 : vector<16x128xf32> to vector<2x8x128xf32>
    %cst_11 = arith.constant dense<0.000000e+00> : vector<8x128xf32>
    %23 = vector.multi_reduction <add>, %22, %cst_11 [0] : vector<2x8x128xf32> to vector<8x128xf32>
    %24 = vector.shape_cast %23 : vector<8x128xf32> to vector<1x8x128xf32>
    %c0_12 = arith.constant 0 : index
    %c0_13 = arith.constant 0 : index
    %c0_14 = arith.constant 0 : index
    %25 = vector.load %arg5[%c0_12, %c0_13, %c0_14] : memref<1x8x128xf32, #tpu.memory_space<vmem>>, vector<1x8x128xf32>
    tpu.vector_store %arg5[%c0_12, %c0_13, %c0_14], %24 {strides = array<i32>} : memref<1x8x128xf32, #tpu.memory_space<vmem>>, vector<1x8x128xf32>,
    return
  }
  func.func @transform_0(%arg0: i32) -> (i32, i32) {
    %c0_i32 = arith.constant 0 : i32
    %c0_i32_0 = arith.constant 0 : i32
    return %arg0, %c0_i32 : i32, i32
  }
  func.func @transform_1(%arg0: i32) -> (i32, i32) {
    %c0_i32 = arith.constant 0 : i32
    %c0_i32_0 = arith.constant 0 : i32
    return %arg0, %c0_i32 : i32, i32
  }
  func.func @transform_2(%arg0: i32) -> (i32, i32) {
    %c0_i32 = arith.constant 0 : i32
    %c0_i32_0 = arith.constant 0 : i32
    return %arg0, %c0_i32 : i32, i32
  }
  func.func @transform_3(%arg0: i32) -> (i32, i32) {
    %c0_i32 = arith.constant 0 : i32
    %c0_i32_0 = arith.constant 0 : i32
    return %arg0, %c0_i32 : i32, i32
  }
  func.func @transform_4(%arg0: i32) -> (i32, i32, i32) {
    %c0_i32 = arith.constant 0 : i32
    %c0_i32_0 = arith.constant 0 : i32
    %c0_i32_1 = arith.constant 0 : i32
    return %arg0, %c0_i32, %c0_i32_0 : i32, i32, i32
  }
}

</mosaic_0001>

<llo_original>
// kernel: tpu_custom_call.1
$region0: #{tpu_custom_call.1}
  #allocation0 [shape = 'u32[]', space=smem, size = 0x4, offset = 0x4, fixed_abs, tag = 'smem constant byte address 0x4 - core index']
  #allocation1 [shape = 'u32[144,128]{1,0:T(1,128)}', space=vmem, size = 0x12000, scoped, tag = 'internal scratch']
  %s0 = inlined_call_operand.hbm [shape: f32[16,128], index: 0, kind: input, shape index: {}]
  %s1 = inlined_call_operand.hbm [shape: f32[16,128], index: 1, kind: input, shape index: {}]
  %s2 = inlined_call_operand.hbm [shape: f32[16,128], index: 2, kind: input, shape index: {}]
  %s3 = inlined_call_operand.hbm [shape: f32[16,128], index: 3, kind: input, shape index: {}]
  %s4 = inlined_call_operand.hbm [shape: f32[1,8,128], index: 4, kind: output, shape index: {}]
  %s5 = sld [smem:[#allocation0]]
  $region42: #{tpu_custom_call.1} parent=0
    _
  %s7 = ssub.s32 1, %s5
  %s8 = scalar_select 0, %s7, %s5
  $region1: #{tpu_custom_call.1} parent=0
    #allocation2 [shape = 'u8[8192]{0}', space=vmem, size = 0x2000, scoped, tag = 'input window, operand 0, single buffered']
    #allocation3 [shape = 's32[1]{0}', space=sflag, size = 0x4, scoped, tag = 'scoped memory for tpu_custom_call.1']
    #allocation4 [shape = 's32[1]{0}', space=sflag, size = 0x4, scoped, tag = 'scoped memory for tpu_custom_call.1']
    #allocation5 [shape = 'u8[8192]{0}', space=vmem, size = 0x2000, scoped, tag = 'input window, operand 1, single buffered']
    #allocation6 [shape = 's32[1]{0}', space=sflag, size = 0x4, scoped, tag = 'scoped memory for tpu_custom_call.1']
    #allocation7 [shape = 'u8[8192]{0}', space=vmem, size = 0x2000, scoped, tag = 'input window, operand 2, single buffered']
    #allocation8 [shape = 'u8[8192]{0}', space=vmem, size = 0x2000, scoped, tag = 'input window, operand 3, single buffered']
    #allocation9 [shape = 's32[1]{0}', space=sflag, size = 0x4, scoped, tag = 'scoped memory for tpu_custom_call.1']
    #allocation10 [shape = 'u8[4096]{0}', space=vmem, size = 0x1000, scoped, tag = 'output window, operand 0, single buffered']
    %9 = vsyncpa [#allocation3], 0
    %10 = vsyncpa [#allocation6], 0
    %11 = vsyncpa [#allocation9], 0
    %12 = vsyncpa [#allocation4], 0
    // Predicated region
    $region2: #{tpu_custom_call.1} parent=1 // pred_check
      _
    $region3: #{tpu_custom_call.1} parent=1 // pred_check_branch
      %14 = sbr.rel (0) target = $region5
    $region4: #{tpu_custom_call.1} parent=1 // pred_region
      %s16 = ssub.s32 256, 256
      %17 = vsyncadd [#allocation3], %s16
      %s18 = sshll.u32 [#allocation2], 4
      %s19 = int_to_ptr.vmem [resolvable:$true] %s18
      %24 = dma.hbm_to_vmem [thread:$0]  %s0, 256, %s19, [#allocation3], 128, 128, 8
    $region5: #{tpu_custom_call.1} parent=1 // pred_fallthru
      _
    // Predicated region
    $region6: #{tpu_custom_call.1} parent=1 // pred_check
      _
    $region7: #{tpu_custom_call.1} parent=1 // pred_check_branch
      %26 = sbr.rel (0) target = $region9
    $region8: #{tpu_custom_call.1} parent=1 // pred_region
      %s28 = ssub.s32 256, 256
      %29 = vsyncadd [#allocation6], %s28
      %s30 = sshll.u32 [#allocation5], 4
      %s31 = int_to_ptr.vmem [resolvable:$true] %s30
      %36 = dma.hbm_to_vmem [thread:$0]  %s1, 256, %s31, [#allocation6], 128, 128, 8
    $region9: #{tpu_custom_call.1} parent=1 // pred_fallthru
      _
    // Predicated region
    $region10: #{tpu_custom_call.1} parent=1 // pred_check
      _
    $region11: #{tpu_custom_call.1} parent=1 // pred_check_branch
      %38 = sbr.rel (0) target = $region13
    $region12: #{tpu_custom_call.1} parent=1 // pred_region
      %s40 = ssub.s32 256, 256
      %41 = vsyncadd [#allocation6], %s40
      %s42 = sshll.u32 [#allocation7], 4
      %s43 = int_to_ptr.vmem [resolvable:$true] %s42
      %48 = dma.hbm_to_vmem [thread:$0]  %s2, 256, %s43, [#allocation6], 128, 128, 8
    $region13: #{tpu_custom_call.1} parent=1 // pred_fallthru
      _
    // Predicated region
    $region14: #{tpu_custom_call.1} parent=1 // pred_check
      _
    $region15: #{tpu_custom_call.1} parent=1 // pred_check_branch
      %50 = sbr.rel (0) target = $region17
    $region16: #{tpu_custom_call.1} parent=1 // pred_region
      %s52 = ssub.s32 256, 256
      %53 = vsyncadd [#allocation9], %s52
      %s54 = sshll.u32 [#allocation8], 4
      %s55 = int_to_ptr.vmem [resolvable:$true] %s54
      %60 = dma.hbm_to_vmem [thread:$0]  %s3, 256, %s55, [#allocation9], 128, 128, 8
    $region17: #{tpu_custom_call.1} parent=1 // pred_fallthru
      _
    // Predicated region
    $region18: #{tpu_custom_call.1} parent=1 // pred_check
      _
    $region19: #{tpu_custom_call.1} parent=1 // pred_check_branch
      %62 = sbr.rel (0) target = $region21
    $region20: #{tpu_custom_call.1} parent=1 // pred_region
      %63 = dma.done [#allocation3], 256
    $region21: #{tpu_custom_call.1} parent=1 // pred_fallthru
      _
    // Predicated region
    $region22: #{tpu_custom_call.1} parent=1 // pred_check
      _
    $region23: #{tpu_custom_call.1} parent=1 // pred_check_branch
      %65 = sbr.rel (0) target = $region25
    $region24: #{tpu_custom_call.1} parent=1 // pred_region
      %66 = dma.done [#allocation6], 256
    $region25: #{tpu_custom_call.1} parent=1 // pred_fallthru
      _
    // Predicated region
    $region26: #{tpu_custom_call.1} parent=1 // pred_check
      _
    $region27: #{tpu_custom_call.1} parent=1 // pred_check_branch
      %68 = sbr.rel (0) target = $region29
    $region28: #{tpu_custom_call.1} parent=1 // pred_region
      %69 = dma.done [#allocation6], 256
    $region29: #{tpu_custom_call.1} parent=1 // pred_fallthru
      _
    // Predicated region
    $region30: #{tpu_custom_call.1} parent=1 // pred_check
      _
    $region31: #{tpu_custom_call.1} parent=1 // pred_check_branch
      %71 = sbr.rel (0) target = $region33
    $region32: #{tpu_custom_call.1} parent=1 // pred_region
      %72 = dma.done [#allocation9], 256
    $region33: #{tpu_custom_call.1} parent=1 // pred_fallthru
      _
    %v73 = vld [vmem:[#allocation2] sm:$0xff]
    %v74 = vld [vmem:[#allocation2 + $0x8] sm:$0xff]
    %v75 = vld [vmem:[#allocation5] sm:$0xff]
    %v76 = vld [vmem:[#allocation5 + $0x8] sm:$0xff]
    %v77 = vld [vmem:[#allocation7] sm:$0xff]
    %v78 = vld [vmem:[#allocation7 + $0x8] sm:$0xff]
    %v79 = vld [vmem:[#allocation8] sm:$0xff]
    %v80 = vld [vmem:[#allocation8 + $0x8] sm:$0xff]
    %vm81 = vcmp.gt.f32.partialorder %v77, %v79
    %vm82 = vcmp.gt.f32.partialorder %v78, %v80
    %vm83 = vcmp.lt.f32.partialorder %v77, %v79
    %vm84 = vcmp.lt.f32.partialorder %v78, %v80
    %v85 = vsel %vm83, 0.0, 0.5
    %v86 = vsel %vm84, 0.0, 0.5
    %v87 = vsel %vm81, 1.0, %v85
    %v88 = vsel %vm82, 1.0, %v86
    %v89 = vsub.f32 %v73, %v75
    %v90 = vsub.f32 %v74, %v76
    %v91 = vmax.f32 %v89, 0.0
    %v92 = vmax.f32 %v90, 0.0
    %v93 = vand.u32 2147483647, %v89
    %v94 = vand.u32 2147483647, %v90
    %v95 = vsub.f32 0.0, %v93
    %v96 = vsub.f32 0.0, %v94
    %v97 = vmul.f32 %v95, 1.442695
    %v98 = vpow.pop %v97
    %v99 = vmul.f32 %v96, 1.442695
    %v100 = vpow.pop %v99
    %v101 = vadd.f32 %v98, 1.0
    %v102 = vlog2.pop %v101
    %v103 = vmul.f32 %v102, 0.6931472
    %v104 = vmul.f32 -0.5, %v98
    %v105 = vadd.f32 %v104, 1.0
    %v106 = vmul.f32 %v105, %v98
    %v107 = vand.u32 2147483647, %v98
    %vm108 = vcmp.lt.f32.partialorder %v107, 0.0004427343
    %v109 = vsel %vm108, %v106, %v103
    %v110 = vadd.f32 %v100, 1.0
    %v111 = vlog2.pop %v110
    %v112 = vmul.f32 %v111, 0.6931472
    %v113 = vmul.f32 -0.5, %v100
    %v114 = vadd.f32 %v113, 1.0
    %v115 = vmul.f32 %v114, %v100
    %v116 = vand.u32 2147483647, %v100
    %vm117 = vcmp.lt.f32.partialorder %v116, 0.0004427343
    %v118 = vsel %vm117, %v115, %v112
    %v119 = vadd.f32 %v91, %v109
    %v120 = vadd.f32 %v92, %v118
    %v121 = vmul.f32 %v87, %v89
    %v122 = vmul.f32 %v88, %v90
    %v123 = vsub.f32 %v119, %v121
    %v124 = vsub.f32 %v120, %v122
    %v125 = vadd.f32 %v123, %v124
    %126 = vst [vmem:[#allocation10] sm:$0xff] %v125
    // Predicated region
    $region34: #{tpu_custom_call.1} parent=1 // pred_check
      _
    $region35: #{tpu_custom_call.1} parent=1 // pred_check_branch
      %128 = sbr.rel (0) target = $region37
    $region36: #{tpu_custom_call.1} parent=1 // pred_region
      %s130 = ssub.s32 128, 128
      %131 = vsyncadd [#allocation4], %s130
      %s133 = sshll.u32 [#allocation10], 4
      %s134 = int_to_ptr.vmem [resolvable:$true] %s133
      %136 = dma.vmem_to_hbm [thread:$0]  %s134, 128, %s4, [#allocation4]
    $region37: #{tpu_custom_call.1} parent=1 // pred_fallthru
      _
    // Predicated region
    $region38: #{tpu_custom_call.1} parent=1 // pred_check
      _
    $region39: #{tpu_custom_call.1} parent=1 // pred_check_branch
      %138 = sbr.rel (0) target = $region41
    $region40: #{tpu_custom_call.1} parent=1 // pred_region
      %139 = dma.done [#allocation4], 128
    $region41: #{tpu_custom_call.1} parent=1 // pred_fallthru
      _
    %140 = vsyncpa [#allocation3], 1
    %141 = vsyncpa [#allocation6], 1
    %142 = vsyncpa [#allocation9], 1
    %143 = vsyncpa [#allocation4], 1

</llo_original>
